<compile_context>
chip_gen: v7x
topology: tpu7x:2x2x1
jax: 0.10.0
libtpu: 0.0.40
codegen_flags: <defaults>
</compile_context>

<pallas_src>
import jax
import jax.numpy as jnp
from jax.experimental import pallas as pl
from jax.experimental.pallas import tpu as pltpu


def mlp_kernel(x_ref, w1_ref, b1_ref, w2_ref, b2_ref, out_ref):
    # x_ref/out_ref: (2, Bt) f32 in VMEM (features on sublanes, batch on lanes)
    # w*_ref: (2, 2) f32 in SMEM (torch layout: [out, in]); b*_ref: (2,) f32 in SMEM
    x0 = x_ref[0:1, :]  # (1, Bt)
    x1 = x_ref[1:2, :]  # (1, Bt)

    # Linear(2 -> 2) + ReLU as VPU FMAs (weights read as scalars from SMEM)
    h0 = jnp.maximum(w1_ref[0, 0] * x0 + w1_ref[0, 1] * x1 + b1_ref[0], 0.0)
    h1 = jnp.maximum(w1_ref[1, 0] * x0 + w1_ref[1, 1] * x1 + b1_ref[1], 0.0)

    # Linear(2 -> 2)
    l0 = w2_ref[0, 0] * h0 + w2_ref[0, 1] * h1 + b2_ref[0]
    l1 = w2_ref[1, 0] * h0 + w2_ref[1, 1] * h1 + b2_ref[1]

    # Softmax over the 2 classes (= the two sublane rows): pure elementwise VPU/EUP
    m = jnp.maximum(l0, l1)
    e0 = jnp.exp(l0 - m)
    e1 = jnp.exp(l1 - m)
    inv = 1.0 / (e0 + e1)  # exact divide to keep 1e-5 tolerance

    # Single lane-dense store of the whole (2, Bt) output block
    out_ref[...] = jnp.concatenate([e0 * inv, e1 * inv], axis=0)


def neural_network_forward(x, w1, b1, w2, b2, *, block_b=128):
    """x: (B, 2, 1) float32 (N, C, W). Returns (B, 2) softmax probabilities."""
    B = x.shape[0]
    # nn.Flatten() then transpose so batch is the lane (last) dimension.
    xt = x.reshape(B, -1).T  # (2, B)

    # Pad batch up to a multiple of the lane-dense tile width.
    Bp = pl.cdiv(B, block_b) * block_b
    if Bp != B:
        xt = jnp.pad(xt, ((0, 0), (0, Bp - B)))
    n_blocks = Bp // block_b

    smem_spec = pl.BlockSpec(memory_space=pltpu.MemorySpace.SMEM)

    out_t = pl.pallas_call(
        mlp_kernel,
        out_shape=jax.ShapeDtypeStruct((2, Bp), jnp.float32),
        grid=(n_blocks,),
        in_specs=[
            pl.BlockSpec((2, block_b), lambda i: (0, i)),  # x tile, lane-dense
            smem_spec,  # w1 (2,2)
            smem_spec,  # b1 (2,)
            smem_spec,  # w2 (2,2)
            smem_spec,  # b2 (2,)
        ],
        out_specs=pl.BlockSpec((2, block_b), lambda i: (0, i)),
        compiler_params=pltpu.CompilerParams(
            dimension_semantics=("parallel",)  # 2x on v7x's two TensorCores
        ),
    )(xt, w1, b1, w2, b2)

    # Drop batch padding and return in the PyTorch (B, 2) layout.
    return out_t[:, :B].T


def init_params(key):
    """Deterministic init mimicking PyTorch's Linear default: U(-1/sqrt(fan_in), 1/sqrt(fan_in))."""
    k1, k2, k3, k4 = jax.random.split(key, 4)
    bound1 = 1.0 / (2 ** 0.5)
    w1 = jax.random.uniform(k1, (2, 2), jnp.float32, -bound1, bound1)  # (out, in)
    b1 = jax.random.uniform(k2, (2,), jnp.float32, -bound1, bound1)
    bound2 = 1.0 / (2 ** 0.5)
    w2 = jax.random.uniform(k3, (2, 2), jnp.float32, -bound2, bound2)  # (out, in)
    b2 = jax.random.uniform(k4, (2,), jnp.float32, -bound2, bound2)
    return w1, b1, w2, b2


if __name__ == "__main__":
    key = jax.random.PRNGKey(0)
    k_x, k_p = jax.random.split(key)

    B = 8
    x = jax.random.normal(k_x, (B, 2, 1), dtype=jnp.float32)  # (N, C, W)
    w1, b1, w2, b2 = init_params(k_p)

    out = neural_network_forward(x, w1, b1, w2, b2)
    out = jax.block_until_ready(out)

    # Reference check in plain JAX (matches the PyTorch forward).
    xf = x.reshape(B, -1)
    h_ref = jnp.maximum(xf @ w1.T + b1, 0.0)
    logits_ref = h_ref @ w2.T + b2
    ref = jax.nn.softmax(logits_ref, axis=1)
    assert out.shape == (B, 2)
    assert jnp.allclose(out, ref, atol=1e-5, rtol=1e-5), "mismatch vs reference"

    print("KERNEL_OK")
</pallas_src>

<mosaic_0001>
module attributes {stable_mosaic.version = 11 : i64} {
  func.func @mlp_kernel(%arg0: i32, %arg1: memref<2x128xf32, #tpu.memory_space<vmem>>, %arg2: memref<2x2xf32, #tpu.memory_space<smem>>, %arg3: memref<2xf32, #tpu.memory_space<smem>>, %arg4: memref<2x2xf32, #tpu.memory_space<smem>>, %arg5: memref<2xf32, #tpu.memory_space<smem>>, %arg6: memref<2x128xf32, #tpu.memory_space<vmem>>) attributes {dimension_semantics = [#tpu.dimension_semantics<parallel>], iteration_bounds = array<i64: 1>, scalar_prefetch = 0 : i64, scratch_operands = 0 : i64, tpu.core_type = #tpu.core_type<tc>, window_params = [{transform_indices = @transform_0, window_bounds = array<i64: 2, 128>}, {transform_indices = @transform_1, window_bounds = array<i64: 2, 2>}, {transform_indices = @transform_2, window_bounds = array<i64: 2>}, {transform_indices = @transform_3, window_bounds = array<i64: 2, 2>}, {transform_indices = @transform_4, window_bounds = array<i64: 2>}, {transform_indices = @transform_5, window_bounds = array<i64: 2, 128>}]} {
    %c0 = arith.constant 0 : index
    %c0_0 = arith.constant 0 : index
    %0 = vector.load %arg1[%c0, %c0_0] : memref<2x128xf32, #tpu.memory_space<vmem>>, vector<1x128xf32>
    %c1 = arith.constant 1 : index
    %c0_1 = arith.constant 0 : index
    %1 = vector.load %arg1[%c1, %c0_1] : memref<2x128xf32, #tpu.memory_space<vmem>>, vector<1x128xf32>
    %c0_2 = arith.constant 0 : index
    %c0_3 = arith.constant 0 : index
    %2 = memref.load %arg2[%c0_2, %c0_3] : memref<2x2xf32, #tpu.memory_space<smem>>
    %3 = vector.broadcast %2 : f32 to vector<1x128xf32>
    %4 = arith.mulf %3, %0 : vector<1x128xf32>
    %c0_4 = arith.constant 0 : index
    %c1_5 = arith.constant 1 : index
    %5 = memref.load %arg2[%c0_4, %c1_5] : memref<2x2xf32, #tpu.memory_space<smem>>
    %6 = vector.broadcast %5 : f32 to vector<1x128xf32>
    %7 = arith.mulf %6, %1 : vector<1x128xf32>
    %8 = arith.addf %4, %7 : vector<1x128xf32>
    %c0_6 = arith.constant 0 : index
    %9 = memref.load %arg3[%c0_6] : memref<2xf32, #tpu.memory_space<smem>>
    %10 = vector.broadcast %9 : f32 to vector<1x128xf32>
    %11 = arith.addf %8, %10 : vector<1x128xf32>
    %cst = arith.constant 0.000000e+00 : f32
    %12 = vector.broadcast %cst : f32 to vector<1x128xf32>
    %13 = arith.maximumf %11, %12 : vector<1x128xf32>
    %c1_7 = arith.constant 1 : index
    %c0_8 = arith.constant 0 : index
    %14 = memref.load %arg2[%c1_7, %c0_8] : memref<2x2xf32, #tpu.memory_space<smem>>
    %15 = vector.broadcast %14 : f32 to vector<1x128xf32>
    %16 = arith.mulf %15, %0 : vector<1x128xf32>
    %c1_9 = arith.constant 1 : index
    %c1_10 = arith.constant 1 : index
    %17 = memref.load %arg2[%c1_9, %c1_10] : memref<2x2xf32, #tpu.memory_space<smem>>
    %18 = vector.broadcast %17 : f32 to vector<1x128xf32>
    %19 = arith.mulf %18, %1 : vector<1x128xf32>
    %20 = arith.addf %16, %19 : vector<1x128xf32>
    %c1_11 = arith.constant 1 : index
    %21 = memref.load %arg3[%c1_11] : memref<2xf32, #tpu.memory_space<smem>>
    %22 = vector.broadcast %21 : f32 to vector<1x128xf32>
    %23 = arith.addf %20, %22 : vector<1x128xf32>
    %cst_12 = arith.constant 0.000000e+00 : f32
    %24 = vector.broadcast %cst_12 : f32 to vector<1x128xf32>
    %25 = arith.maximumf %23, %24 : vector<1x128xf32>
    %c0_13 = arith.constant 0 : index
    %c0_14 = arith.constant 0 : index
    %26 = memref.load %arg4[%c0_13, %c0_14] : memref<2x2xf32, #tpu.memory_space<smem>>
    %27 = vector.broadcast %26 : f32 to vector<1x128xf32>
    %28 = arith.mulf %27, %13 : vector<1x128xf32>
    %c0_15 = arith.constant 0 : index
    %c1_16 = arith.constant 1 : index
    %29 = memref.load %arg4[%c0_15, %c1_16] : memref<2x2xf32, #tpu.memory_space<smem>>
    %30 = vector.broadcast %29 : f32 to vector<1x128xf32>
    %31 = arith.mulf %30, %25 : vector<1x128xf32>
    %32 = arith.addf %28, %31 : vector<1x128xf32>
    %c0_17 = arith.constant 0 : index
    %33 = memref.load %arg5[%c0_17] : memref<2xf32, #tpu.memory_space<smem>>
    %34 = vector.broadcast %33 : f32 to vector<1x128xf32>
    %35 = arith.addf %32, %34 : vector<1x128xf32>
    %c1_18 = arith.constant 1 : index
    %c0_19 = arith.constant 0 : index
    %36 = memref.load %arg4[%c1_18, %c0_19] : memref<2x2xf32, #tpu.memory_space<smem>>
    %37 = vector.broadcast %36 : f32 to vector<1x128xf32>
    %38 = arith.mulf %37, %13 : vector<1x128xf32>
    %c1_20 = arith.constant 1 : index
    %c1_21 = arith.constant 1 : index
    %39 = memref.load %arg4[%c1_20, %c1_21] : memref<2x2xf32, #tpu.memory_space<smem>>
    %40 = vector.broadcast %39 : f32 to vector<1x128xf32>
    %41 = arith.mulf %40, %25 : vector<1x128xf32>
    %42 = arith.addf %38, %41 : vector<1x128xf32>
    %c1_22 = arith.constant 1 : index
    %43 = memref.load %arg5[%c1_22] : memref<2xf32, #tpu.memory_space<smem>>
    %44 = vector.broadcast %43 : f32 to vector<1x128xf32>
    %45 = arith.addf %42, %44 : vector<1x128xf32>
    %46 = arith.maximumf %35, %45 : vector<1x128xf32>
    %47 = arith.subf %35, %46 : vector<1x128xf32>
    %48 = math.exp %47 : vector<1x128xf32>
    %49 = arith.subf %45, %46 : vector<1x128xf32>
    %50 = math.exp %49 : vector<1x128xf32>
    %51 = arith.addf %48, %50 : vector<1x128xf32>
    %cst_23 = arith.constant 1.000000e+00 : f32
    %52 = vector.broadcast %cst_23 : f32 to vector<1x128xf32>
    %53 = arith.divf %52, %51 : vector<1x128xf32>
    %54 = arith.mulf %48, %53 : vector<1x128xf32>
    %55 = arith.mulf %50, %53 : vector<1x128xf32>
    %56 = tpu.concatenate %54, %55 in 0 : vector<1x128xf32>, vector<1x128xf32> -> vector<2x128xf32>
    %c0_24 = arith.constant 0 : index
    %c0_25 = arith.constant 0 : index
    %57 = vector.load %arg6[%c0_24, %c0_25] : memref<2x128xf32, #tpu.memory_space<vmem>>, vector<2x128xf32>
    tpu.vector_store %arg6[%c0_24, %c0_25], %56 {strides = array<i32>} : memref<2x128xf32, #tpu.memory_space<vmem>>, vector<2x128xf32>,
    return
  }
  func.func @transform_0(%arg0: i32) -> (i32, i32) {
    %c0_i32 = arith.constant 0 : i32
    %c0_i32_0 = arith.constant 0 : i32
    return %c0_i32, %arg0 : i32, i32
  }
  func.func @transform_1(%arg0: i32) -> (i32, i32) {
    %c0_i32 = arith.constant 0 : i32
    %c0_i32_0 = arith.constant 0 : i32
    %c0_i32_1 = arith.constant 0 : i32
    return %c0_i32, %c0_i32_0 : i32, i32
  }
  func.func @transform_2(%arg0: i32) -> i32 {
    %c0_i32 = arith.constant 0 : i32
    %c0_i32_0 = arith.constant 0 : i32
    return %c0_i32 : i32
  }
  func.func @transform_3(%arg0: i32) -> (i32, i32) {
    %c0_i32 = arith.constant 0 : i32
    %c0_i32_0 = arith.constant 0 : i32
    %c0_i32_1 = arith.constant 0 : i32
    return %c0_i32, %c0_i32_0 : i32, i32
  }
  func.func @transform_4(%arg0: i32) -> i32 {
    %c0_i32 = arith.constant 0 : i32
    %c0_i32_0 = arith.constant 0 : i32
    return %c0_i32 : i32
  }
  func.func @transform_5(%arg0: i32) -> (i32, i32) {
    %c0_i32 = arith.constant 0 : i32
    %c0_i32_0 = arith.constant 0 : i32
    return %c0_i32, %arg0 : i32, i32
  }
}

</mosaic_0001>

<llo_original>
// kernel: tpu_custom_call.1
$region0: #{tpu_custom_call.1}
  #allocation0 [shape = 'u32[]', space=smem, size = 0x4, offset = 0x4, fixed_abs, tag = 'smem constant byte address 0x4 - core index']
  #allocation1 [shape = 'u32[144,128]{1,0:T(1,128)}', space=vmem, size = 0x12000, scoped, tag = 'internal scratch']
  %s0 = inlined_call_operand.hbm [shape: f32[2,128], index: 0, kind: input, shape index: {}]
  %s1 = inlined_call_operand.vmem [shape: f32[2,2], index: 1, kind: input, shape index: {}]
  %s2 = inlined_call_operand.vmem [shape: f32[2], index: 2, kind: input, shape index: {}]
  %s3 = inlined_call_operand.vmem [shape: f32[2,2], index: 3, kind: input, shape index: {}]
  %s4 = inlined_call_operand.vmem [shape: f32[2], index: 4, kind: input, shape index: {}]
  %s5 = inlined_call_operand.hbm [shape: f32[2,128], index: 5, kind: output, shape index: {}]
  %s6 = sld [smem:[#allocation0]]
  $region50: #{tpu_custom_call.1} parent=0
    _
  %s8 = ssub.s32 1, %s6
  %s9 = scalar_select 0, %s8, %s6
  $region1: #{tpu_custom_call.1} parent=0
    #allocation2 [shape = 'u8[1024]{0}', space=vmem, size = 0x400, scoped, tag = 'input window, operand 0, single buffered']
    #allocation3 [shape = 's32[1]{0}', space=sflag, size = 0x4, scoped, tag = 'scoped memory for tpu_custom_call.1']
    #allocation4 [shape = 's32[1]{0}', space=sflag, size = 0x4, scoped, tag = 'scoped memory for tpu_custom_call.1']
    #allocation5 [shape = 's32[1]{0}', space=sflag, size = 0x4, scoped, tag = 'scoped memory for tpu_custom_call.1']
    #allocation6 [shape = 'u8[1024]{0}', space=smem, size = 0x400, scoped, tag = 'input window, operand 1, single buffered']
    #allocation7 [shape = 'u8[512]{0}', space=smem, size = 0x200, scoped, tag = 'input window, operand 2, single buffered']
    #allocation8 [shape = 's32[1]{0}', space=sflag, size = 0x4, scoped, tag = 'scoped memory for tpu_custom_call.1']
    #allocation9 [shape = 'u8[1024]{0}', space=smem, size = 0x400, scoped, tag = 'input window, operand 3, single buffered']
    #allocation10 [shape = 'u8[512]{0}', space=smem, size = 0x200, scoped, tag = 'input window, operand 4, single buffered']
    #allocation11 [shape = 's32[1]{0}', space=sflag, size = 0x4, scoped, tag = 'scoped memory for tpu_custom_call.1']
    #allocation12 [shape = 'u8[1024]{0}', space=vmem, size = 0x400, scoped, tag = 'output window, operand 0, single buffered']
    %10 = vsyncpa [#allocation3], 0
    %11 = vsyncpa [#allocation5], 0
    %12 = vsyncpa [#allocation8], 0
    %13 = vsyncpa [#allocation11], 0
    %14 = vsyncpa [#allocation4], 0
    // Predicated region
    $region2: #{tpu_custom_call.1} parent=1 // pred_check
      _
    $region3: #{tpu_custom_call.1} parent=1 // pred_check_branch
      %16 = sbr.rel (0) target = $region5
    $region4: #{tpu_custom_call.1} parent=1 // pred_region
      %s18 = ssub.s32 32, 32
      %19 = vsyncadd [#allocation3], %s18
      %s21 = sshll.u32 [#allocation2], 4
      %s22 = int_to_ptr.vmem [resolvable:$true] %s21
      %24 = dma.hbm_to_vmem [thread:$0]  %s0, 32, %s22, [#allocation3]
    $region5: #{tpu_custom_call.1} parent=1 // pred_fallthru
      _
    // Predicated region
    $region6: #{tpu_custom_call.1} parent=1 // pred_check
      _
    $region7: #{tpu_custom_call.1} parent=1 // pred_check_branch
      %26 = sbr.rel (0) target = $region9
    $region8: #{tpu_custom_call.1} parent=1 // pred_region
      %s28 = ssub.s32 32, 32
      %29 = vsyncadd [#allocation5], %s28
      %s31 = sshll.u32 %s1, 4
      %s32 = int_to_ptr.vmem [resolvable:$true] %s31
      %34 = dma.vmem_to_smem %s32, 32, [#allocation6], [#allocation5]
    $region9: #{tpu_custom_call.1} parent=1 // pred_fallthru
      _
    // Predicated region
    $region10: #{tpu_custom_call.1} parent=1 // pred_check
      _
    $region11: #{tpu_custom_call.1} parent=1 // pred_check_branch
      %36 = sbr.rel (0) target = $region13
    $region12: #{tpu_custom_call.1} parent=1 // pred_region
      %s38 = ssub.s32 16, 16
      %39 = vsyncadd [#allocation8], %s38
      %s41 = sshll.u32 %s2, 4
      %s42 = int_to_ptr.vmem [resolvable:$true] %s41
      %44 = dma.vmem_to_smem %s42, 16, [#allocation7], [#allocation8]
    $region13: #{tpu_custom_call.1} parent=1 // pred_fallthru
      _
    // Predicated region
    $region14: #{tpu_custom_call.1} parent=1 // pred_check
      _
    $region15: #{tpu_custom_call.1} parent=1 // pred_check_branch
      %46 = sbr.rel (0) target = $region17
    $region16: #{tpu_custom_call.1} parent=1 // pred_region
      %s48 = ssub.s32 32, 32
      %49 = vsyncadd [#allocation8], %s48
      %s51 = sshll.u32 %s3, 4
      %s52 = int_to_ptr.vmem [resolvable:$true] %s51
      %54 = dma.vmem_to_smem %s52, 32, [#allocation9], [#allocation8]
    $region17: #{tpu_custom_call.1} parent=1 // pred_fallthru
      _
    // Predicated region
    $region18: #{tpu_custom_call.1} parent=1 // pred_check
      _
    $region19: #{tpu_custom_call.1} parent=1 // pred_check_branch
      %56 = sbr.rel (0) target = $region21
    $region20: #{tpu_custom_call.1} parent=1 // pred_region
      %s58 = ssub.s32 16, 16
      %59 = vsyncadd [#allocation11], %s58
      %s61 = sshll.u32 %s4, 4
      %s62 = int_to_ptr.vmem [resolvable:$true] %s61
      %64 = dma.vmem_to_smem %s62, 16, [#allocation10], [#allocation11]
    $region21: #{tpu_custom_call.1} parent=1 // pred_fallthru
      _
    // Predicated region
    $region22: #{tpu_custom_call.1} parent=1 // pred_check
      _
    $region23: #{tpu_custom_call.1} parent=1 // pred_check_branch
      %66 = sbr.rel (0) target = $region25
    $region24: #{tpu_custom_call.1} parent=1 // pred_region
      %67 = dma.done [#allocation3], 32
    $region25: #{tpu_custom_call.1} parent=1 // pred_fallthru
      _
    // Predicated region
    $region26: #{tpu_custom_call.1} parent=1 // pred_check
      _
    $region27: #{tpu_custom_call.1} parent=1 // pred_check_branch
      %69 = sbr.rel (0) target = $region29
    $region28: #{tpu_custom_call.1} parent=1 // pred_region
      %70 = dma.done [#allocation5], 32
    $region29: #{tpu_custom_call.1} parent=1 // pred_fallthru
      _
    // Predicated region
    $region30: #{tpu_custom_call.1} parent=1 // pred_check
      _
    $region31: #{tpu_custom_call.1} parent=1 // pred_check_branch
      %72 = sbr.rel (0) target = $region33
    $region32: #{tpu_custom_call.1} parent=1 // pred_region
      %73 = dma.done [#allocation8], 16
    $region33: #{tpu_custom_call.1} parent=1 // pred_fallthru
      _
    // Predicated region
    $region34: #{tpu_custom_call.1} parent=1 // pred_check
      _
    $region35: #{tpu_custom_call.1} parent=1 // pred_check_branch
      %75 = sbr.rel (0) target = $region37
    $region36: #{tpu_custom_call.1} parent=1 // pred_region
      %76 = dma.done [#allocation8], 32
    $region37: #{tpu_custom_call.1} parent=1 // pred_fallthru
      _
    // Predicated region
    $region38: #{tpu_custom_call.1} parent=1 // pred_check
      _
    $region39: #{tpu_custom_call.1} parent=1 // pred_check_branch
      %78 = sbr.rel (0) target = $region41
    $region40: #{tpu_custom_call.1} parent=1 // pred_region
      %79 = dma.done [#allocation11], 16
    $region41: #{tpu_custom_call.1} parent=1 // pred_fallthru
      _
    %80 = sfence
    %v81 = vld [vmem:[#allocation2] sm:$0x1]
    %v82 = vld [vmem:[#allocation2 + $0x1] sm:$0x1]
    %s83 = sld [smem:[#allocation6]]
    %v84 = vstv %s83
    %v85 = vmul.f32 %v84, %v81
    %s86 = sld [smem:[#allocation6 + $0x1]]
    %v87 = vstv %s86
    %v88 = vmul.f32 %v87, %v82
    %v89 = vadd.f32 %v85, %v88
    %s90 = sld [smem:[#allocation7]]
    %v91 = vstv %s90
    %v92 = vadd.f32 %v89, %v91
    %v93 = vmax.f32 %v92, 0.0
    %s94 = sld [smem:[#allocation6 + $0x80]]
    %v95 = vstv %s94
    %v96 = vmul.f32 %v95, %v81
    %s97 = sld [smem:[#allocation6 + $0x81]]
    %v98 = vstv %s97
    %v99 = vmul.f32 %v98, %v82
    %v100 = vadd.f32 %v96, %v99
    %s101 = sld [smem:[#allocation7 + $0x1]]
    %v102 = vstv %s101
    %v103 = vadd.f32 %v100, %v102
    %v104 = vmax.f32 %v103, 0.0
    %s105 = sld [smem:[#allocation9]]
    %v106 = vstv %s105
    %v107 = vmul.f32 %v106, %v93
    %s108 = sld [smem:[#allocation9 + $0x1]]
    %v109 = vstv %s108
    %v110 = vmul.f32 %v109, %v104
    %v111 = vadd.f32 %v107, %v110
    %s112 = sld [smem:[#allocation10]]
    %v113 = vstv %s112
    %v114 = vadd.f32 %v111, %v113
    %s115 = sld [smem:[#allocation9 + $0x80]]
    %v116 = vstv %s115
    %v117 = vmul.f32 %v116, %v93
    %s118 = sld [smem:[#allocation9 + $0x81]]
    %v119 = vstv %s118
    %v120 = vmul.f32 %v119, %v104
    %v121 = vadd.f32 %v117, %v120
    %s122 = sld [smem:[#allocation10 + $0x1]]
    %v123 = vstv %s122
    %v124 = vadd.f32 %v121, %v123
    %v125 = vmax.f32 %v114, %v124
    %v126 = vsub.f32 %v114, %v125
    %v127 = vmul.f32 %v126, 1.442695
    %v128 = vpow.pop %v127
    %v129 = vsub.f32 %v124, %v125
    %v130 = vmul.f32 %v129, 1.442695
    %v131 = vpow.pop %v130
    %v132 = vadd.f32 %v128, %v131
    %v133 = vrcp.pop %v132
    %v134 = vmul.f32 1.0, %v133
    %v135 = vmul.f32 %v128, %v134
    %v136 = vmul.f32 %v131, %v134
    %v138 = vrot.slane %v136, 7
    %vm140 = vcmask 1040384
    %v141 = vsel %vm140, %v135, %v138
    %142 = vst [vmem:[#allocation12] sm:$0x3] %v141
    // Predicated region
    $region42: #{tpu_custom_call.1} parent=1 // pred_check
      _
    $region43: #{tpu_custom_call.1} parent=1 // pred_check_branch
      %144 = sbr.rel (0) target = $region45
    $region44: #{tpu_custom_call.1} parent=1 // pred_region
      %s146 = ssub.s32 32, 32
      %147 = vsyncadd [#allocation4], %s146
      %s149 = sshll.u32 [#allocation12], 4
      %s150 = int_to_ptr.vmem [resolvable:$true] %s149
      %152 = dma.vmem_to_hbm [thread:$0]  %s150, 32, %s5, [#allocation4]
    $region45: #{tpu_custom_call.1} parent=1 // pred_fallthru
      _
    // Predicated region
    $region46: #{tpu_custom_call.1} parent=1 // pred_check
      _
    $region47: #{tpu_custom_call.1} parent=1 // pred_check_branch
      %154 = sbr.rel (0) target = $region49
    $region48: #{tpu_custom_call.1} parent=1 // pred_region
      %155 = dma.done [#allocation4], 32
    $region49: #{tpu_custom_call.1} parent=1 // pred_fallthru
      _
    %156 = vsyncpa [#allocation3], 1
    %157 = vsyncpa [#allocation4], 1
    %158 = vsyncpa [#allocation5], 1
    %159 = vsyncpa [#allocation8], 1
    %160 = vsyncpa [#allocation11], 1

</llo_original>
